<compile_context>
chip_gen: v6e
topology: v6e:2x2x1
jax: 0.10.0
libtpu: 0.0.40
codegen_flags: <defaults>
</compile_context>

<pallas_src>
import numpy as np

import jax
import jax.numpy as jnp
from jax.experimental import pallas as pl
from jax.experimental.pallas import tpu as pltpu


# ----------------------------- helpers --------------------------------------

def _round_up(x, m):
    return ((x + m - 1) // m) * m


def _cdiv(a, b):
    return (a + b - 1) // b


def _pick_tile(dim, candidates=(512, 384, 256, 128)):
    """Largest multiple-of-128 tile that exactly divides `dim` (dim % 128 == 0)."""
    for c in candidates:
        if dim % c == 0:
            return c
    return 128


def _gate_lane_tile(L, max_tile=2048):
    """Lane tile for the element-wise path: largest multiple-of-128 divisor of L
    (capped at max_tile); full-dim block when L is not a multiple of 128."""
    if L % 128 != 0:
        return L
    best, t = 128, 128
    while t <= min(L, max_tile):
        if L % t == 0:
            best = t
        t += 128
    return best


def _batch_tiles(B, tb_max):
    """Return (tb, n_bt, Bp) with minimal padding (never ~2x over-padding)."""
    if B <= tb_max:
        return B, 1, B                       # single full-dim block, no pad
    n = _cdiv(B, tb_max)
    tb = _round_up(_cdiv(B, n), 8)
    return tb, n, tb * n                     # pad <= 8 * n rows


# ----------------------------- kernels --------------------------------------

def _attn_gate_kernel(zs_ref, zt_ref, wh_ref, out_ref):
    """Non-fullattn path (pure VPU, HBM-bound).

    (1 - s)*zs + s*(zs + zt)/2  ==  zs + (s/2)*(zt - zs),  s = sigmoid(w).
    wh_ref already holds 0.5 * sigmoid(w) (computed once in the wrapper).
    """
    zs = zs_ref[...]
    out_ref[...] = zs + wh_ref[...] * (zt_ref[...] - zs)


def _attn_full_resident_kernel(zs_ref, zt_ref, w_ref, out_ref):
    """Fullattn path, W (= sigmoid of the parameter) resident in VMEM.

    One fused zs + zt @ W per batch tile; f32 accumulation on the MXU.
    """
    acc = jnp.dot(zt_ref[...], w_ref[...], preferred_element_type=jnp.float32)
    out_ref[...] = (zs_ref[...].astype(jnp.float32) + acc).astype(out_ref.dtype)


def _attn_full_streamed_kernel(zs_ref, zt_ref, w_ref, out_ref, acc_ref):
    """Fullattn fallback for very large latent sizes: K-tiled, f32 accumulator.

    sigmoid(W) is precomputed in the wrapper; this kernel only does MXU work.
    """
    k = pl.program_id(2)

    @pl.when(k == 0)
    def _():
        acc_ref[...] = zs_ref[...].astype(jnp.float32)

    acc_ref[...] += jnp.dot(zt_ref[...], w_ref[...],
                            preferred_element_type=jnp.float32)

    @pl.when(k == pl.num_programs(2) - 1)
    def _():
        out_ref[...] = acc_ref[...].astype(out_ref.dtype)


# ----------------------------- wrapper --------------------------------------

class AttentionNetPallas:
    """JAX/Pallas port of the PyTorch attentionNet module (forward only)."""

    def __init__(self, latent_size, fullattn=False, key=None, mxu_dtype=None):
        self.fullattn = fullattn
        self.latent_size = latent_size
        # Optional lower-precision matmul dtype (e.g. jnp.bfloat16) for the
        # zt @ sigmoid(W) product on v6e/v7x; f32 accumulation is always kept.
        self.mxu_dtype = mxu_dtype
        if key is None:
            key = jax.random.PRNGKey(0)
        if fullattn:
            self.w = jax.random.normal(
                key, (latent_size, latent_size), dtype=jnp.float32) / 100.0
        else:
            self.w = jax.random.normal(
                key, (latent_size,), dtype=jnp.float32) / 100.0

    # ------------------------- gate (vector-w) path -------------------------
    def _forward_gate(self, zs, zt):
        B, L = zs.shape
        dt = zs.dtype
        # sigmoid (and the /2) hoisted out of the kernel; w is only (L,).
        w_half = (0.5 * jax.nn.sigmoid(self.w)).astype(dt).reshape(1, L)

        # Lane tiling (only when L is a multiple of 128), full-dim block else.
        tl = _gate_lane_tile(L)
        grid_l = L // tl

        # Batch tile sized against a ~12 MiB streaming budget:
        # 3 big streams (zs, zt, out) x 2 pipeline buffers (v5e-safe).
        tb_max = (12 * 1024 * 1024) // (6 * tl * 4)
        tb_max = max(8, min(512, (tb_max // 8) * 8))
        if B <= tb_max:
            tb, grid_b = B, 1                     # full-dim block, never pad batch
        else:
            tb = tb_max
            grid_b = _cdiv(B, tb)                 # ragged last block: writes masked

        vmem = int(1.3 * (6 * tb * tl + 2 * tl) * 4) + (1 << 20)
        vmem = min(max(vmem, 16 << 20), 48 << 20)

        return pl.pallas_call(
            _attn_gate_kernel,
            out_shape=jax.ShapeDtypeStruct((B, L), dt),
            grid=(grid_b, grid_l),
            in_specs=[
                pl.BlockSpec((tb, tl), lambda i, j: (i, j)),
                pl.BlockSpec((tb, tl), lambda i, j: (i, j)),
                pl.BlockSpec((1, tl), lambda i, j: (0, j)),
            ],
            out_specs=pl.BlockSpec((tb, tl), lambda i, j: (i, j)),
            compiler_params=pltpu.CompilerParams(
                dimension_semantics=("parallel", "parallel"),
                vmem_limit_bytes=vmem),
        )(zs, zt, w_half)

    # ------------------------- full-attention path --------------------------
    def _forward_full(self, zs, zt):
        B, L = zs.shape
        out_dt = zs.dtype
        Lp = max(128, _round_up(L, 128))
        pad_L = Lp != L

        mm_dt = self.mxu_dtype if self.mxu_dtype is not None else jnp.float32
        # sigmoid(W) computed ONCE here (never inside the K-loop / batch loop).
        w_sig = jax.nn.sigmoid(self.w).astype(mm_dt)
        zt_mm = zt.astype(mm_dt)

        if pad_L:
            # Padding is applied AFTER the sigmoid: padded rows/cols of w_sig
            # are exactly 0 and padded zt columns are exactly 0, so the
            # contraction over k >= L contributes nothing (exact in bf16 too).
            zs_p = jnp.pad(zs, ((0, 0), (0, Lp - L)))
            zt_p = jnp.pad(zt_mm, ((0, 0), (0, Lp - L)))
            w_p = jnp.pad(w_sig, ((0, Lp - L), (0, Lp - L)))
        else:
            zs_p, zt_p, w_p = zs, zt_mm, w_sig

        tb, n_bt, Bp = _batch_tiles(B, 256)
        pad_B = Bp != B
        if pad_B:
            zs_p = jnp.pad(zs_p, ((0, Bp - B), (0, 0)))
            zt_p = jnp.pad(zt_p, ((0, Bp - B), (0, 0)))

        w_bytes = Lp * Lp * np.dtype(mm_dt).itemsize
        resident = w_bytes <= (8 << 20)          # W kept resident in VMEM

        if resident:
            blk = tb * Lp * 4
            # 2 buffers for W are budgeted even though it is fetched only once.
            vmem = int(1.3 * (2 * w_bytes + 8 * blk)) + (2 << 20)
            vmem = min(max(vmem, 16 << 20), 48 << 20)
            zst_p = pl.pallas_call(
                _attn_full_resident_kernel,
                out_shape=jax.ShapeDtypeStruct((Bp, Lp), out_dt),
                grid=(n_bt,),
                in_specs=[
                    pl.BlockSpec((tb, Lp), lambda i: (i, 0)),     # zs
                    pl.BlockSpec((tb, Lp), lambda i: (i, 0)),     # zt
                    pl.BlockSpec((Lp, Lp), lambda i: (0, 0)),     # W: resident
                ],
                out_specs=pl.BlockSpec((tb, Lp), lambda i: (i, 0)),
                compiler_params=pltpu.CompilerParams(
                    dimension_semantics=("parallel",),
                    vmem_limit_bytes=vmem),
            )(zs_p, zt_p, w_p)
        else:
            # Streamed fallback: tiles chosen to exactly divide Lp -> full
            # grid coverage for any L (fixes the Lp-not-multiple-of-512 bug).
            tn = _pick_tile(Lp)
            tk = _pick_tile(Lp)
            vmem = int(1.3 * 4 * (2 * (tb * tn + tb * tk + tk * tn)
                                  + 2 * tb * tn)) + (2 << 20)
            vmem = min(max(vmem, 16 << 20), 48 << 20)
            zst_p = pl.pallas_call(
                _attn_full_streamed_kernel,
                out_shape=jax.ShapeDtypeStruct((Bp, Lp), out_dt),
                grid=(n_bt, Lp // tn, Lp // tk),
                in_specs=[
                    pl.BlockSpec((tb, tn), lambda i, j, k: (i, j)),   # zs
                    pl.BlockSpec((tb, tk), lambda i, j, k: (i, k)),   # zt
                    pl.BlockSpec((tk, tn), lambda i, j, k: (k, j)),   # sigmoid(W)
                ],
                out_specs=pl.BlockSpec((tb, tn), lambda i, j, k: (i, j)),
                scratch_shapes=[pltpu.VMEM((tb, tn), jnp.float32)],
                compiler_params=pltpu.CompilerParams(
                    dimension_semantics=("parallel", "parallel", "arbitrary"),
                    vmem_limit_bytes=vmem),
            )(zs_p, zt_p, w_p)

        if pad_B or pad_L:
            zst_p = zst_p[:B, :L]
        return zst_p

    # ------------------------------ forward ---------------------------------
    def __call__(self, inputs, is_detach=True):
        zs = inputs['zs']
        zt = inputs['zt']
        if is_detach:
            zs = jax.lax.stop_gradient(zs)
            zt = jax.lax.stop_gradient(zt)
        if self.fullattn:
            zst = self._forward_full(zs, zt)
        else:
            zst = self._forward_gate(zs, zt)
        return {'zst': zst}


# ----------------------------- reference ------------------------------------

def _ref_forward(zs, zt, w, fullattn):
    wsig = jax.nn.sigmoid(w)
    if fullattn:
        return zs + zt @ wsig
    return (1.0 - wsig) * zs + wsig * (zs + zt) / 2.0


# ----------------------------- main -----------------------------------------

if __name__ == "__main__":
    key = jax.random.PRNGKey(0)

    # Small deterministic (batch, latent) shapes: aligned and unaligned cases.
    for (batch, latent) in [(8, 32), (10, 40), (8, 128), (16, 256)]:
        key, k_zs, k_zt, k_wg, k_wf = jax.random.split(key, 5)
        zs = jax.random.normal(k_zs, (batch, latent), dtype=jnp.float32)
        zt = jax.random.normal(k_zt, (batch, latent), dtype=jnp.float32)
        inputs = {'zs': zs, 'zt': zt}

        # Non-full attention (default path of the PyTorch module).
        net = AttentionNetPallas(latent, fullattn=False, key=k_wg)
        out = net(inputs)['zst']
        jax.block_until_ready(out)
        ref = _ref_forward(zs, zt, net.w, fullattn=False)
        assert out.shape == ref.shape, f"gate shape mismatch at {(batch, latent)}"
        assert jnp.allclose(out, ref, atol=1e-5, rtol=1e-5), \
            f"gate path mismatch at {(batch, latent)}"

        # Full-attention path (latent x latent weight, f32 MXU).
        net_full = AttentionNetPallas(latent, fullattn=True, key=k_wf)
        out_full = net_full(inputs)['zst']
        jax.block_until_ready(out_full)
        ref_full = _ref_forward(zs, zt, net_full.w, fullattn=True)
        assert out_full.shape == ref_full.shape, \
            f"full shape mismatch at {(batch, latent)}"
        assert jnp.allclose(out_full, ref_full, atol=1e-5, rtol=1e-5), \
            f"full path mismatch at {(batch, latent)}"

    # Optional bf16 MXU path (v6e/v7x fast path), looser tolerance.
    key, k_zs, k_zt, k_w = jax.random.split(key, 4)
    zs = jax.random.normal(k_zs, (16, 256), dtype=jnp.float32)
    zt = jax.random.normal(k_zt, (16, 256), dtype=jnp.float32)
    net_bf16 = AttentionNetPallas(256, fullattn=True, key=k_w,
                                  mxu_dtype=jnp.bfloat16)
    out_bf = net_bf16({'zs': zs, 'zt': zt})['zst']
    jax.block_until_ready(out_bf)
    ref_bf = _ref_forward(zs, zt, net_bf16.w, fullattn=True)
    assert out_bf.shape == ref_bf.shape, "bf16 full shape mismatch"
    assert jnp.allclose(out_bf, ref_bf, atol=2.5e-1, rtol=5e-2), \
        "bf16 full path mismatch"

    print("KERNEL_OK")
</pallas_src>

<mosaic_0001>
module attributes {stable_mosaic.version = 11 : i64} {
  func.func @_attn_gate_kernel(%arg0: i32, %arg1: i32, %arg2: memref<8x32xf32, #tpu.memory_space<vmem>>, %arg3: memref<8x32xf32, #tpu.memory_space<vmem>>, %arg4: memref<1x32xf32, #tpu.memory_space<vmem>>, %arg5: memref<8x32xf32, #tpu.memory_space<vmem>>) attributes {dimension_semantics = [#tpu.dimension_semantics<parallel>, #tpu.dimension_semantics<parallel>], iteration_bounds = array<i64: 1, 1>, scalar_prefetch = 0 : i64, scratch_operands = 0 : i64, tpu.core_type = #tpu.core_type<tc>, window_params = [{transform_indices = @transform_0, window_bounds = array<i64: 8, 32>}, {transform_indices = @transform_1, window_bounds = array<i64: 8, 32>}, {transform_indices = @transform_2, window_bounds = array<i64: 1, 32>}, {transform_indices = @transform_3, window_bounds = array<i64: 8, 32>}]} {
    %c0 = arith.constant 0 : index
    %c0_0 = arith.constant 0 : index
    %0 = vector.load %arg2[%c0, %c0_0] : memref<8x32xf32, #tpu.memory_space<vmem>>, vector<8x32xf32>
    %c0_1 = arith.constant 0 : index
    %c0_2 = arith.constant 0 : index
    %1 = vector.load %arg4[%c0_1, %c0_2] : memref<1x32xf32, #tpu.memory_space<vmem>>, vector<1x32xf32>
    %c0_3 = arith.constant 0 : index
    %c0_4 = arith.constant 0 : index
    %2 = vector.load %arg3[%c0_3, %c0_4] : memref<8x32xf32, #tpu.memory_space<vmem>>, vector<8x32xf32>
    %3 = arith.subf %2, %0 : vector<8x32xf32>
    %4 = vector.broadcast %1 : vector<1x32xf32> to vector<8x32xf32>
    %5 = arith.mulf %4, %3 : vector<8x32xf32>
    %6 = arith.addf %0, %5 : vector<8x32xf32>
    %c0_5 = arith.constant 0 : index
    %c0_6 = arith.constant 0 : index
    %7 = vector.load %arg5[%c0_5, %c0_6] : memref<8x32xf32, #tpu.memory_space<vmem>>, vector<8x32xf32>
    tpu.vector_store %arg5[%c0_5, %c0_6], %6 {strides = array<i32>} : memref<8x32xf32, #tpu.memory_space<vmem>>, vector<8x32xf32>,
    return
  }
  func.func @transform_0(%arg0: i32, %arg1: i32) -> (i32, i32) {
    %c0_i32 = arith.constant 0 : i32
    return %arg0, %arg1 : i32, i32
  }
  func.func @transform_1(%arg0: i32, %arg1: i32) -> (i32, i32) {
    %c0_i32 = arith.constant 0 : i32
    return %arg0, %arg1 : i32, i32
  }
  func.func @transform_2(%arg0: i32, %arg1: i32) -> (i32, i32) {
    %c0_i32 = arith.constant 0 : i32
    %c0_i32_0 = arith.constant 0 : i32
    return %c0_i32, %arg1 : i32, i32
  }
  func.func @transform_3(%arg0: i32, %arg1: i32) -> (i32, i32) {
    %c0_i32 = arith.constant 0 : i32
    return %arg0, %arg1 : i32, i32
  }
}

</mosaic_0001>

<llo_original>
// kernel: tpu_custom_call.1
$region0: #{tpu_custom_call.1}
  #allocation0 [shape = 'u32[]', space=smem, size = 0x4, offset = 0x4, fixed_abs, tag = 'smem constant byte address 0x4 - core index']
  #allocation1 [shape = 'u32[144,128]{1,0:T(1,128)}', space=vmem, size = 0x12000, scoped, tag = 'internal scratch']
  %s0 = inlined_call_operand.hbm [shape: f32[8,32], index: 0, kind: input, shape index: {}]
  %s1 = inlined_call_operand.hbm [shape: f32[8,32], index: 1, kind: input, shape index: {}]
  %s2 = inlined_call_operand.vmem [shape: f32[1,32], index: 2, kind: input, shape index: {}]
  %s3 = inlined_call_operand.hbm [shape: f32[8,32], index: 3, kind: output, shape index: {}]
  %s4 = sld [smem:[#allocation0]]
  $region30: #{tpu_custom_call.1} parent=0
    _
  %s6 = ssub.s32 1, %s4
  %s7 = scalar_select 0, %s6, %s4
  $region1: #{tpu_custom_call.1} parent=0
    #allocation2 [shape = 'u8[4096]{0}', space=vmem, size = 0x1000, scoped, tag = 'input window, operand 0, single buffered']
    #allocation3 [shape = 's32[1]{0}', space=sflag, size = 0x4, scoped, tag = 'scoped memory for tpu_custom_call.1']
    #allocation4 [shape = 's32[1]{0}', space=sflag, size = 0x4, scoped, tag = 'scoped memory for tpu_custom_call.1']
    #allocation5 [shape = 'u8[4096]{0}', space=vmem, size = 0x1000, scoped, tag = 'input window, operand 1, single buffered']
    #allocation6 [shape = 's32[1]{0}', space=sflag, size = 0x4, scoped, tag = 'scoped memory for tpu_custom_call.1']
    #allocation7 [shape = 'u8[4096]{0}', space=vmem, size = 0x1000, scoped, tag = 'output window, operand 0, single buffered']
    %8 = vsyncpa [#allocation3], 0
    %9 = vsyncpa [#allocation6], 0
    %10 = vsyncpa [#allocation4], 0
    // Predicated region
    $region2: #{tpu_custom_call.1} parent=1 // pred_check
      _
    $region3: #{tpu_custom_call.1} parent=1 // pred_check_branch
      %12 = sbr.rel (0) target = $region5
    $region4: #{tpu_custom_call.1} parent=1 // pred_region
      %s14 = ssub.s32 128, 128
      %15 = vsyncadd [#allocation3], %s14
      %s17 = sshll.u32 [#allocation2], 4
      %s18 = int_to_ptr.vmem [resolvable:$true] %s17
      %20 = dma.hbm_to_vmem [thread:$0]  %s0, 128, %s18, [#allocation3]
    $region5: #{tpu_custom_call.1} parent=1 // pred_fallthru
      _
    // Predicated region
    $region6: #{tpu_custom_call.1} parent=1 // pred_check
      _
    $region7: #{tpu_custom_call.1} parent=1 // pred_check_branch
      %22 = sbr.rel (0) target = $region9
    $region8: #{tpu_custom_call.1} parent=1 // pred_region
      %s24 = ssub.s32 128, 128
      %25 = vsyncadd [#allocation6], %s24
      %s27 = sshll.u32 [#allocation5], 4
      %s28 = int_to_ptr.vmem [resolvable:$true] %s27
      %30 = dma.hbm_to_vmem [thread:$0]  %s1, 128, %s28, [#allocation6]
    $region9: #{tpu_custom_call.1} parent=1 // pred_fallthru
      _
    // Predicated region
    $region10: #{tpu_custom_call.1} parent=1 // pred_check
      _
    $region11: #{tpu_custom_call.1} parent=1 // pred_check_branch
      %32 = sbr.rel (0) target = $region13
    $region12: #{tpu_custom_call.1} parent=1 // pred_region
      _
    $region13: #{tpu_custom_call.1} parent=1 // pred_fallthru
      _
    // Predicated region
    $region14: #{tpu_custom_call.1} parent=1 // pred_check
      _
    $region15: #{tpu_custom_call.1} parent=1 // pred_check_branch
      %34 = sbr.rel (0) target = $region17
    $region16: #{tpu_custom_call.1} parent=1 // pred_region
      %35 = dma.done [#allocation3], 128
    $region17: #{tpu_custom_call.1} parent=1 // pred_fallthru
      _
    // Predicated region
    $region18: #{tpu_custom_call.1} parent=1 // pred_check
      _
    $region19: #{tpu_custom_call.1} parent=1 // pred_check_branch
      %37 = sbr.rel (0) target = $region21
    $region20: #{tpu_custom_call.1} parent=1 // pred_region
      %38 = dma.done [#allocation6], 128
    $region21: #{tpu_custom_call.1} parent=1 // pred_fallthru
      _
    %v39 = vld [vmem:[#allocation2] sm:$0xff]
    %v40 = vld [vmem:[%s2] sm:$0x1]
    %v41 = vld [vmem:[#allocation5] sm:$0xff]
    %v42 = vsub.f32 %v41, %v39
    %v44 = vlaneseq
    %v45 = vshrl.u32 %v44, 7
    %v46 = vsub.s32 0, %v45
    %v47 = vrot.slane %v40, %v46
    %v49 = vmul.f32 %v47, %v42
    %v50 = vadd.f32 %v39, %v49
    %vm51 = vcmask 261120
    %52 = vst.msk [vmem:[#allocation7] sm:$0xff] %vm51, %v50
    // Predicated region
    $region22: #{tpu_custom_call.1} parent=1 // pred_check
      _
    $region23: #{tpu_custom_call.1} parent=1 // pred_check_branch
      %54 = sbr.rel (0) target = $region25
    $region24: #{tpu_custom_call.1} parent=1 // pred_region
      %s56 = ssub.s32 128, 128
      %57 = vsyncadd [#allocation4], %s56
      %s59 = sshll.u32 [#allocation7], 4
      %s60 = int_to_ptr.vmem [resolvable:$true] %s59
      %62 = dma.vmem_to_hbm [thread:$0]  %s60, 128, %s3, [#allocation4]
    $region25: #{tpu_custom_call.1} parent=1 // pred_fallthru
      _
    // Predicated region
    $region26: #{tpu_custom_call.1} parent=1 // pred_check
      _
    $region27: #{tpu_custom_call.1} parent=1 // pred_check_branch
      %64 = sbr.rel (0) target = $region29
    $region28: #{tpu_custom_call.1} parent=1 // pred_region
      %65 = dma.done [#allocation4], 128
    $region29: #{tpu_custom_call.1} parent=1 // pred_fallthru
      _
    %66 = vsyncpa [#allocation3], 1
    %67 = vsyncpa [#allocation6], 1
    %68 = vsyncpa [#allocation4], 1

</llo_original>
